<compile_context>
chip_gen: v7x
topology: tpu7x:2x2x1
jax: 0.10.0
libtpu: 0.0.40
codegen_flags: <defaults>
</compile_context>

<pallas_src>
import functools

import jax
import jax.numpy as jnp
from jax.experimental import pallas as pl
from jax.experimental.pallas import tpu as pltpu


def _round_up(x, m):
    return ((x + m - 1) // m) * m


def _vmem_budget_bytes():
    # Per-generation VMEM budget: ~3/4 of physical capacity (v5e/v6e 128 MiB
    # -> 96 MiB, v7x 64 MiB -> 48 MiB), leaving headroom for compiler scratch.
    try:
        cap = int(pltpu.get_tpu_info().vmem_capacity_bytes)
    except Exception:
        cap = 64 * 1024 * 1024
    return (cap * 3) // 4


def _pick_tile_m(rows, K, c_pad, budget_bytes):
    # Double-buffered bf16 patch tile (lanes pad to 128) + f32 output tile.
    lanes_k = _round_up(K, 128)
    per_row = 2 * (lanes_k * 2 + c_pad * 4)
    tile = 4096
    while tile > 256 and tile * per_row > budget_bytes // 2:
        tile //= 2
    tile = min(tile, _round_up(rows, 16))
    return max(tile, 16)


def _convblock_kernel(p_ref, w_ref, shift_ref, o_ref):
    # p_ref:     (TILE_M, K)     bf16 im2col patches (K = k*k*Cin, unpadded)
    # w_ref:     (K, C_pad)      bf16 weights with BN scale folded in
    # shift_ref: (1, C_pad)      f32 folded BN shift
    # o_ref:     (TILE_M, C_pad)
    acc = jnp.dot(p_ref[...], w_ref[...], preferred_element_type=jnp.float32)
    y = acc + shift_ref[...]                       # folded BatchNorm (eval)

    # Mish: y * tanh(softplus(y)), softplus threshold = 20 (PyTorch semantics).
    # tanh(log1p(e)) == u / (u + 2) with u = e*(e+2): numerically stable for
    # e << 1, and exactly 1 EUP exp + 1 EUP approx reciprocal per element.
    e = jnp.exp(jnp.minimum(y, 20.0))
    u = e * (e + 2.0)
    t = u * pl.reciprocal(u + 2.0, approx=True)
    # For y > 20: softplus(y) = y and tanh(y) == 1.0 in f32 -> mish(y) = y.
    o_ref[...] = jnp.where(y > 20.0, y, y * t).astype(o_ref.dtype)


@functools.partial(jax.jit, static_argnames=("stride",))
def conv_block(x_nchw, w_oihw, gamma, beta, run_mean, run_var,
               stride=1, eps=1e-5):
    N, Cin, H, W = x_nchw.shape
    Cout, _, k, _ = w_oihw.shape
    assert k % 2 == 1, "pad=(k-1)//2 matches nn.Conv2d only for odd kernel_size"
    pad = (k - 1) // 2
    Ho = (H + 2 * pad - k) // stride + 1
    Wo = (W + 2 * pad - k) // stride + 1
    K = k * k * Cin
    M = Ho * Wo
    R = N * M

    # ---------- wrapper-side glue (plain JAX) ----------
    # Cast to bf16 BEFORE building the im2col slab (halves its HBM footprint)
    # and keep K unpadded in HBM (removes the 36->128 lane-pad inflation).
    # TODO(synk): remove the remaining k^2 im2col blow-up by DMA-ing raw NHWC
    # rows (with a (k-1)-row halo) into VMEM and building the patch tile
    # in-kernel; needs element-offset row blocks / manual make_async_copy.
    x_nhwc = jnp.transpose(x_nchw, (0, 2, 3, 1)).astype(jnp.bfloat16)
    x_pad = jnp.pad(x_nhwc, ((0, 0), (pad, pad), (pad, pad), (0, 0)))

    taps = []
    for ky in range(k):
        for kx in range(k):
            taps.append(x_pad[:, ky:ky + (Ho - 1) * stride + 1:stride,
                                 kx:kx + (Wo - 1) * stride + 1:stride, :])
    # (N, Ho, Wo, k*k, Cin) -> (N*Ho*Wo, K); tap order (ky, kx), Cin innermost.
    patches = jnp.stack(taps, axis=3).reshape(R, K)

    # Fold inference BatchNorm into the weights / a single per-channel shift.
    scale = gamma / jnp.sqrt(run_var + eps)                    # (Cout,)
    shift = beta - run_mean * scale                            # (Cout,)
    w_hwio = jnp.transpose(w_oihw, (2, 3, 1, 0))               # (k,k,Cin,Cout)
    w_mat = (w_hwio * scale).reshape(K, Cout)                  # BN scale folded

    # Lane-dense output channels; rows padded to a VMEM-budget-driven tile.
    C_pad = _round_up(Cout, 128)
    budget = _vmem_budget_bytes()
    tile_m = _pick_tile_m(R, K, C_pad, budget)
    R_pad = _round_up(R, tile_m)

    patches = jnp.pad(patches, ((0, R_pad - R), (0, 0)))       # bf16 already
    w_mat = jnp.pad(w_mat, ((0, 0), (0, C_pad - Cout))).astype(jnp.bfloat16)
    shift_p = jnp.pad(shift, ((0, C_pad - Cout),)).reshape(1, C_pad)
    shift_p = shift_p.astype(jnp.float32)

    grid = (R_pad // tile_m,)
    out = pl.pallas_call(
        _convblock_kernel,
        out_shape=jax.ShapeDtypeStruct((R_pad, C_pad), x_nchw.dtype),
        grid_spec=pltpu.PrefetchScalarGridSpec(
            num_scalar_prefetch=0,
            grid=grid,
            in_specs=[
                pl.BlockSpec((tile_m, K), lambda i: (i, 0)),
                # Constant-index blocks: the pipeline DMAs them once (block
                # index never changes).  For very large weights on v7x,
                # pipeline_mode=pl.Buffered(1) would also drop the unused
                # second buffer; the weights here are tiny (K x 128 bf16).
                pl.BlockSpec((K, C_pad), lambda i: (0, 0)),
                pl.BlockSpec((1, C_pad), lambda i: (0, 0)),
            ],
            out_specs=pl.BlockSpec((tile_m, C_pad), lambda i: (i, 0)),
        ),
        compiler_params=pltpu.CompilerParams(
            dimension_semantics=("parallel",),
            vmem_limit_bytes=int(budget),
        ),
    )(patches, w_mat, shift_p)

    # Slice away padding, back to NCHW (module semantics).
    # TODO(synk): if the downstream consumer accepts NHWC / bf16, skip this
    # transpose (an extra HBM round trip) and emit bf16 to halve the store.
    out = out[:R, :Cout].reshape(N, Ho, Wo, Cout)
    return jnp.transpose(out, (0, 3, 1, 2))


def _reference(x_nchw, w_oihw, gamma, beta, run_mean, run_var, stride=1, eps=1e-5):
    """Plain-JAX f32 reference (conv + eval BN + mish), NCHW."""
    y = jax.lax.conv_general_dilated(
        x_nchw, w_oihw, window_strides=(stride, stride),
        padding=[((w_oihw.shape[2] - 1) // 2,) * 2] * 2,
        dimension_numbers=("NCHW", "OIHW", "NCHW"))
    sc = (gamma / jnp.sqrt(run_var + eps)).reshape(1, -1, 1, 1)
    sh = (beta - run_mean * gamma / jnp.sqrt(run_var + eps)).reshape(1, -1, 1, 1)
    y = y * sc + sh
    sp = jnp.where(y > 20.0, y, jnp.log1p(jnp.exp(jnp.minimum(y, 20.0))))
    return y * jnp.tanh(sp)


if __name__ == "__main__":
    # ConvBlock(in_channels=4, out_channels=8, kernel_size=3, stride=1,
    #           activation='mish', dropblock=False, bn=True, bias=False)
    # TODO(synk): DropBlock2D is stochastic and training-only; inference
    # (identity) semantics are used here, as is eval-mode BatchNorm.
    N, Cin, H, W = 2, 4, 16, 16
    Cout, k, stride = 8, 3, 1

    key = jax.random.PRNGKey(0)
    kx, kw, kg, kb, km, kv = jax.random.split(key, 6)
    x = jax.random.normal(kx, (N, Cin, H, W), jnp.float32)
    w = jax.random.normal(kw, (Cout, Cin, k, k), jnp.float32) * 0.1
    gamma = 1.0 + 0.1 * jax.random.normal(kg, (Cout,), jnp.float32)
    beta = 0.1 * jax.random.normal(kb, (Cout,), jnp.float32)
    run_mean = 0.05 * jax.random.normal(km, (Cout,), jnp.float32)
    run_var = 0.5 + jnp.abs(jax.random.normal(kv, (Cout,), jnp.float32))

    out = conv_block(x, w, gamma, beta, run_mean, run_var, stride=stride)
    out = jax.block_until_ready(out)

    ref = _reference(x, w, gamma, beta, run_mean, run_var, stride=stride)
    assert out.shape == (N, Cout, H, W), out.shape
    # bf16 MXU operands + approx reciprocal in the Mish epilogue (inference
    # accuracy) -> loosened tolerance vs the f32 reference.
    assert jnp.allclose(out, ref, atol=2e-2, rtol=2e-2), float(
        jnp.max(jnp.abs(out - ref)))

    print("KERNEL_OK")
</pallas_src>

<mosaic_0001>
module attributes {stable_mosaic.version = 11 : i64} {
  func.func @_convblock_kernel(%arg0: i32, %arg1: memref<512x36xbf16, #tpu.memory_space<vmem>>, %arg2: memref<36x128xbf16, #tpu.memory_space<vmem>>, %arg3: memref<1x128xf32, #tpu.memory_space<vmem>>, %arg4: memref<512x128xf32, #tpu.memory_space<vmem>>) attributes {dimension_semantics = [#tpu.dimension_semantics<parallel>], iteration_bounds = array<i64: 1>, scalar_prefetch = 0 : i64, scratch_operands = 0 : i64, tpu.core_type = #tpu.core_type<tc>, window_params = [{transform_indices = @transform_0, window_bounds = array<i64: 512, 36>}, {pipeline_mode = #tpu.pipeline_mode<synchronous>, transform_indices = @transform_1, window_bounds = array<i64: 36, 128>}, {pipeline_mode = #tpu.pipeline_mode<synchronous>, transform_indices = @transform_2, window_bounds = array<i64: 1, 128>}, {transform_indices = @transform_3, window_bounds = array<i64: 512, 128>}]} {
    %c0 = arith.constant 0 : index
    %c0_0 = arith.constant 0 : index
    %0 = vector.load %arg1[%c0, %c0_0] : memref<512x36xbf16, #tpu.memory_space<vmem>>, vector<512x36xbf16>
    %c0_1 = arith.constant 0 : index
    %c0_2 = arith.constant 0 : index
    %1 = vector.load %arg2[%c0_1, %c0_2] : memref<36x128xbf16, #tpu.memory_space<vmem>>, vector<36x128xbf16>
    %cst = arith.constant dense<0.000000e+00> : vector<512x128xf32>
    %2 = tpu.matmul %0, %1, %cst {dimension_numbers = #tpu.dot_dimension_numbers<[1], [0], [0], [1], [0, 0, 1, 1], [], []>} : vector<512x36xbf16>, vector<36x128xbf16>, vector<512x128xf32> -> vector<512x128xf32>
    %c0_3 = arith.constant 0 : index
    %c0_4 = arith.constant 0 : index
    %3 = vector.load %arg3[%c0_3, %c0_4] : memref<1x128xf32, #tpu.memory_space<vmem>>, vector<1x128xf32>
    %4 = vector.broadcast %3 : vector<1x128xf32> to vector<512x128xf32>
    %5 = arith.addf %2, %4 : vector<512x128xf32>
    %cst_5 = arith.constant 2.000000e+01 : f32
    %6 = vector.broadcast %cst_5 : f32 to vector<512x128xf32>
    %7 = arith.minimumf %5, %6 : vector<512x128xf32>
    %8 = math.exp %7 : vector<512x128xf32>
    %cst_6 = arith.constant 2.000000e+00 : f32
    %9 = vector.broadcast %cst_6 : f32 to vector<512x128xf32>
    %10 = arith.addf %8, %9 : vector<512x128xf32>
    %11 = arith.mulf %8, %10 : vector<512x128xf32>
    %cst_7 = arith.constant 2.000000e+00 : f32
    %12 = vector.broadcast %cst_7 : f32 to vector<512x128xf32>
    %13 = arith.addf %11, %12 : vector<512x128xf32>
    %14 = tpu.reciprocal %13 {approx = true} : vector<512x128xf32> -> vector<512x128xf32>
    %15 = arith.mulf %11, %14 : vector<512x128xf32>
    %cst_8 = arith.constant 2.000000e+01 : f32
    %16 = vector.broadcast %cst_8 : f32 to vector<512x128xf32>
    %17 = arith.cmpf ogt, %5, %16 : vector<512x128xf32>
    %18 = arith.mulf %5, %15 : vector<512x128xf32>
    %19 = arith.select %17, %5, %18 : vector<512x128xi1>, vector<512x128xf32>
    %c0_9 = arith.constant 0 : index
    %c0_10 = arith.constant 0 : index
    %20 = vector.load %arg4[%c0_9, %c0_10] : memref<512x128xf32, #tpu.memory_space<vmem>>, vector<512x128xf32>
    tpu.vector_store %arg4[%c0_9, %c0_10], %19 {strides = array<i32>} : memref<512x128xf32, #tpu.memory_space<vmem>>, vector<512x128xf32>,
    return
  }
  func.func @transform_0(%arg0: i32) -> (i32, i32) {
    %c0_i32 = arith.constant 0 : i32
    %c0_i32_0 = arith.constant 0 : i32
    return %arg0, %c0_i32 : i32, i32
  }
  func.func @transform_1(%arg0: i32) -> (i32, i32) {
    %c0_i32 = arith.constant 0 : i32
    %c0_i32_0 = arith.constant 0 : i32
    %c0_i32_1 = arith.constant 0 : i32
    return %c0_i32, %c0_i32_0 : i32, i32
  }
  func.func @transform_2(%arg0: i32) -> (i32, i32) {
    %c0_i32 = arith.constant 0 : i32
    %c0_i32_0 = arith.constant 0 : i32
    %c0_i32_1 = arith.constant 0 : i32
    return %c0_i32, %c0_i32_0 : i32, i32
  }
  func.func @transform_3(%arg0: i32) -> (i32, i32) {
    %c0_i32 = arith.constant 0 : i32
    %c0_i32_0 = arith.constant 0 : i32
    return %arg0, %c0_i32 : i32, i32
  }
}

</mosaic_0001>

<llo_original>
// kernel: conv_block.1
$region0: #{conv_block.1}
  #allocation0 [shape = 'u32[]', space=smem, size = 0x4, offset = 0x4, fixed_abs, tag = 'smem constant byte address 0x4 - core index']
  #allocation1 [shape = 'u32[144,128]{1,0:T(1,128)}', space=vmem, size = 0x12000, scoped, tag = 'internal scratch']
  %s0 = inlined_call_operand.vmem [shape: bf16[512,36], index: 0, kind: input, shape index: {}]
  %s1 = inlined_call_operand.vmem [shape: bf16[36,128], index: 1, kind: input, shape index: {}]
  %s2 = inlined_call_operand.vmem [shape: f32[1,128], index: 2, kind: input, shape index: {}]
  %s3 = inlined_call_operand.vmem [shape: f32[512,128], index: 3, kind: output, shape index: {}]
  %s4 = sld [smem:[#allocation0]]
  $region22: #{conv_block.1} parent=0
    _
  %s6 = ssub.s32 1, %s4
  %s7 = scalar_select 0, %s6, %s4
  // Predicated region
  $region2: #{conv_block.1} parent=0 // pred_check
    _
  $region3: #{conv_block.1} parent=0 // pred_check_branch
    %9 = sbr.rel (0) target = $region5
  $region4: #{conv_block.1} parent=0 // pred_region
    _
  $region5: #{conv_block.1} parent=0 // pred_fallthru
    _
  // Predicated region
  $region6: #{conv_block.1} parent=0 // pred_check
    _
  $region7: #{conv_block.1} parent=0 // pred_check_branch
    %11 = sbr.rel (0) target = $region9
  $region8: #{conv_block.1} parent=0 // pred_region
    _
  $region9: #{conv_block.1} parent=0 // pred_fallthru
    _
  // Predicated region
  $region10: #{conv_block.1} parent=0 // pred_check
    _
  $region11: #{conv_block.1} parent=0 // pred_check_branch
    %13 = sbr.rel (0) target = $region13
  $region12: #{conv_block.1} parent=0 // pred_region
    _
  $region13: #{conv_block.1} parent=0 // pred_fallthru
    _
  %v15 = vld [vmem:[%s0] sm:$0xf]
  %v16 = vld [vmem:[%s0 + $0x4] sm:$0xf]
  %v17 = vld [vmem:[%s0 + $0x8] sm:$0xf]
  %v18 = vld [vmem:[%s0 + $0xc] sm:$0xf]
  %v19 = vld [vmem:[%s0 + $0x10] sm:$0xf]
  %v20 = vld [vmem:[%s0 + $0x14] sm:$0xf]
  %v21 = vld [vmem:[%s0 + $0x18] sm:$0xf]
  %v22 = vld [vmem:[%s0 + $0x1c] sm:$0xf]
  %v23 = vld [vmem:[%s0 + $0x20] sm:$0xf]
  %v24 = vld [vmem:[%s0 + $0x24] sm:$0xf]
  %v25 = vld [vmem:[%s0 + $0x28] sm:$0xf]
  %v26 = vld [vmem:[%s0 + $0x2c] sm:$0xf]
  %v27 = vld [vmem:[%s0 + $0x30] sm:$0xf]
  %v28 = vld [vmem:[%s0 + $0x34] sm:$0xf]
  %v29 = vld [vmem:[%s0 + $0x38] sm:$0xf]
  %v30 = vld [vmem:[%s0 + $0x3c] sm:$0xf]
  %v31 = vld [vmem:[%s0 + $0x40] sm:$0xf]
  %v32 = vld [vmem:[%s0 + $0x44] sm:$0xf]
  %v33 = vld [vmem:[%s0 + $0x48] sm:$0xf]
  %v34 = vld [vmem:[%s0 + $0x4c] sm:$0xf]
  %v35 = vld [vmem:[%s0 + $0x50] sm:$0xf]
  %v36 = vld [vmem:[%s0 + $0x54] sm:$0xf]
  %v37 = vld [vmem:[%s0 + $0x58] sm:$0xf]
  %v38 = vld [vmem:[%s0 + $0x5c] sm:$0xf]
  %v39 = vld [vmem:[%s0 + $0x60] sm:$0xf]
  %v40 = vld [vmem:[%s0 + $0x64] sm:$0xf]
  %v41 = vld [vmem:[%s0 + $0x68] sm:$0xf]
  %v42 = vld [vmem:[%s0 + $0x6c] sm:$0xf]
  %v43 = vld [vmem:[%s0 + $0x70] sm:$0xf]
  %v44 = vld [vmem:[%s0 + $0x74] sm:$0xf]
  %v45 = vld [vmem:[%s0 + $0x78] sm:$0xf]
  %v46 = vld [vmem:[%s0 + $0x7c] sm:$0xf]
  %v47 = vld [vmem:[%s0 + $0x80] sm:$0xf]
  %v48 = vld [vmem:[%s0 + $0x84] sm:$0xf]
  %v49 = vld [vmem:[%s0 + $0x88] sm:$0xf]
  %v50 = vld [vmem:[%s0 + $0x8c] sm:$0xf]
  %v51 = vld [vmem:[%s0 + $0x90] sm:$0xf]
  %v52 = vld [vmem:[%s0 + $0x94] sm:$0xf]
  %v53 = vld [vmem:[%s0 + $0x98] sm:$0xf]
  %v54 = vld [vmem:[%s0 + $0x9c] sm:$0xf]
  %v55 = vld [vmem:[%s0 + $0xa0] sm:$0xf]
  %v56 = vld [vmem:[%s0 + $0xa4] sm:$0xf]
  %v57 = vld [vmem:[%s0 + $0xa8] sm:$0xf]
  %v58 = vld [vmem:[%s0 + $0xac] sm:$0xf]
  %v59 = vld [vmem:[%s0 + $0xb0] sm:$0xf]
  %v60 = vld [vmem:[%s0 + $0xb4] sm:$0xf]
  %v61 = vld [vmem:[%s0 + $0xb8] sm:$0xf]
  %v62 = vld [vmem:[%s0 + $0xbc] sm:$0xf]
  %v63 = vld [vmem:[%s0 + $0xc0] sm:$0xf]
  %v64 = vld [vmem:[%s0 + $0xc4] sm:$0xf]
  %v65 = vld [vmem:[%s0 + $0xc8] sm:$0xf]
  %v66 = vld [vmem:[%s0 + $0xcc] sm:$0xf]
  %v67 = vld [vmem:[%s0 + $0xd0] sm:$0xf]
  %v68 = vld [vmem:[%s0 + $0xd4] sm:$0xf]
  %v69 = vld [vmem:[%s0 + $0xd8] sm:$0xf]
  %v70 = vld [vmem:[%s0 + $0xdc] sm:$0xf]
  %v71 = vld [vmem:[%s0 + $0xe0] sm:$0xf]
  %v72 = vld [vmem:[%s0 + $0xe4] sm:$0xf]
  %v73 = vld [vmem:[%s0 + $0xe8] sm:$0xf]
  %v74 = vld [vmem:[%s0 + $0xec] sm:$0xf]
  %v75 = vld [vmem:[%s0 + $0xf0] sm:$0xf]
  %v76 = vld [vmem:[%s0 + $0xf4] sm:$0xf]
  %v77 = vld [vmem:[%s0 + $0xf8] sm:$0xf]
  %v78 = vld [vmem:[%s0 + $0xfc] sm:$0xf]
  %v79 = vld [vmem:[%s1] sm:$0xf]
  %v80 = vld [vmem:[%s1 + $0x4] sm:$0xf]
  %v81 = vld [vmem:[%s1 + $0x8] sm:$0xf]
  %v82 = vld [vmem:[%s1 + $0xc] sm:$0xf]
  %v83 = vld [vmem:[%s1 + $0x10] sm:$0x3]
  %v84 = vld [vmem:[%s2] sm:$0x1]
  %v86 = vlaneseq
  %v87 = vshrl.u32 %v86, 7
  %v88 = vsub.s32 0, %v87
  %v89 = vrot.slane %v84, %v88
  %v155 = vunpack.c.l.b16 %v15
  %v156 = vunpack.c.l.b16 %v16
  %v157 = vunpack.c.l.b16 %v17
  %v158 = vunpack.c.l.b16 %v18
  %v159 = vunpack.c.l.b16 %v19
  %v160 = vunpack.c.l.b16 %v20
  %v161 = vunpack.c.l.b16 %v21
  %v162 = vunpack.c.l.b16 %v22
  %v163 = vunpack.c.l.b16 %v23
  %v164 = vunpack.c.l.b16 %v24
  %v165 = vunpack.c.l.b16 %v25
  %v166 = vunpack.c.l.b16 %v26
  %v167 = vunpack.c.l.b16 %v27
  %v168 = vunpack.c.l.b16 %v28
  %v169 = vunpack.c.l.b16 %v29
  %v170 = vunpack.c.l.b16 %v30
  %v171 = vunpack.c.l.b16 %v31
  %v172 = vunpack.c.l.b16 %v32
  %v173 = vunpack.c.l.b16 %v33
  %v174 = vunpack.c.l.b16 %v34
  %v175 = vunpack.c.l.b16 %v35
  %v176 = vunpack.c.l.b16 %v36
  %v177 = vunpack.c.l.b16 %v37
  %v178 = vunpack.c.l.b16 %v38
  %v179 = vunpack.c.l.b16 %v39
  %v180 = vunpack.c.l.b16 %v40
  %v181 = vunpack.c.l.b16 %v41
  %v182 = vunpack.c.l.b16 %v42
  %v183 = vunpack.c.l.b16 %v43
  %v184 = vunpack.c.l.b16 %v44
  %v185 = vunpack.c.l.b16 %v45
  %v186 = vunpack.c.l.b16 %v46
  %v187 = vunpack.c.l.b16 %v47
  %v188 = vunpack.c.l.b16 %v48
  %v189 = vunpack.c.l.b16 %v49
  %v190 = vunpack.c.l.b16 %v50
  %v191 = vunpack.c.l.b16 %v51
  %v192 = vunpack.c.l.b16 %v52
  %v193 = vunpack.c.l.b16 %v53
  %v194 = vunpack.c.l.b16 %v54
  %v195 = vunpack.c.l.b16 %v55
  %v196 = vunpack.c.l.b16 %v56
  %v197 = vunpack.c.l.b16 %v57
  %v198 = vunpack.c.l.b16 %v58
  %v199 = vunpack.c.l.b16 %v59
  %v200 = vunpack.c.l.b16 %v60
  %v201 = vunpack.c.l.b16 %v61
  %v202 = vunpack.c.l.b16 %v62
  %v203 = vunpack.c.l.b16 %v63
  %v204 = vunpack.c.l.b16 %v64
  %v205 = vunpack.c.l.b16 %v65
  %v206 = vunpack.c.l.b16 %v66
  %v207 = vunpack.c.l.b16 %v67
  %v208 = vunpack.c.l.b16 %v68
  %v209 = vunpack.c.l.b16 %v69
  %v210 = vunpack.c.l.b16 %v70
  %v211 = vunpack.c.l.b16 %v71
  %v212 = vunpack.c.l.b16 %v72
  %v213 = vunpack.c.l.b16 %v73
  %v214 = vunpack.c.l.b16 %v74
  %v215 = vunpack.c.l.b16 %v75
  %v216 = vunpack.c.l.b16 %v76
  %v217 = vunpack.c.l.b16 %v77
  %v218 = vunpack.c.l.b16 %v78
  %v219 = vpack.c.b16 %v156, %v155
  %v220 = vpack.c.b16 %v158, %v157
  %v221 = vpack.c.b16 %v160, %v159
  %v222 = vpack.c.b16 %v162, %v161
  %v223 = vpack.c.b16 %v164, %v163
  %v224 = vpack.c.b16 %v166, %v165
  %v225 = vpack.c.b16 %v168, %v167
  %v226 = vpack.c.b16 %v170, %v169
  %v227 = vpack.c.b16 %v172, %v171
  %v228 = vpack.c.b16 %v174, %v173
  %v229 = vpack.c.b16 %v176, %v175
  %v230 = vpack.c.b16 %v178, %v177
  %v231 = vpack.c.b16 %v180, %v179
  %v232 = vpack.c.b16 %v182, %v181
  %v233 = vpack.c.b16 %v184, %v183
  %v234 = vpack.c.b16 %v186, %v185
  %v235 = vpack.c.b16 %v188, %v187
  %v236 = vpack.c.b16 %v190, %v189
  %v237 = vpack.c.b16 %v192, %v191
  %v238 = vpack.c.b16 %v194, %v193
  %v239 = vpack.c.b16 %v196, %v195
  %v240 = vpack.c.b16 %v198, %v197
  %v241 = vpack.c.b16 %v200, %v199
  %v242 = vpack.c.b16 %v202, %v201
  %v243 = vpack.c.b16 %v204, %v203
  %v244 = vpack.c.b16 %v206, %v205
  %v245 = vpack.c.b16 %v208, %v207
  %v246 = vpack.c.b16 %v210, %v209
  %v247 = vpack.c.b16 %v212, %v211
  %v248 = vpack.c.b16 %v214, %v213
  %v249 = vpack.c.b16 %v216, %v215
  %v250 = vpack.c.b16 %v218, %v217
  %v256 = vunpack.c.l.b16 %v79
  %v257 = vunpack.c.l.b16 %v80
  %v258 = vunpack.c.l.b16 %v81
  %v259 = vunpack.c.l.b16 %v82
  %v260 = vunpack.c.l.b16 %v83
  %v261 = vpack.c.b16 %v257, %v256
  %v262 = vpack.c.b16 %v259, %v258
  %v263 = vpack.c.b16 %v260, %v260
  %vm266 = vcmask 293888
  %v268 = vsel %vm266, %v219, 0
  %v271 = vsel %vm266, %v220, 0
  %v274 = vsel %vm266, %v221, 0
  %v277 = vsel %vm266, %v222, 0
  %v280 = vsel %vm266, %v223, 0
  %v283 = vsel %vm266, %v224, 0
  %v286 = vsel %vm266, %v225, 0
  %v289 = vsel %vm266, %v226, 0
  %v292 = vsel %vm266, %v227, 0
  %v295 = vsel %vm266, %v228, 0
  %v298 = vsel %vm266, %v229, 0
  %v301 = vsel %vm266, %v230, 0
  %v304 = vsel %vm266, %v231, 0
  %v307 = vsel %vm266, %v232, 0
  %v310 = vsel %vm266, %v233, 0
  %v313 = vsel %vm266, %v234, 0
  %v316 = vsel %vm266, %v235, 0
  %v319 = vsel %vm266, %v236, 0
  %v322 = vsel %vm266, %v237, 0
  %v325 = vsel %vm266, %v238, 0
  %v328 = vsel %vm266, %v239, 0
  %v331 = vsel %vm266, %v240, 0
  %v334 = vsel %vm266, %v241, 0
  %v337 = vsel %vm266, %v242, 0
  %v340 = vsel %vm266, %v243, 0
  %v343 = vsel %vm266, %v244, 0
  %v346 = vsel %vm266, %v245, 0
  %v349 = vsel %vm266, %v246, 0
  %v352 = vsel %vm266, %v247, 0
  %v355 = vsel %vm266, %v248, 0
  %v358 = vsel %vm266, %v249, 0
  %v361 = vsel %vm266, %v250, 0
  %vm363 = vcmask 1041408
  %v365 = vsel %vm363, %v263, 0
  %367 = vmatprep.subr.bf16.mxu0 0
  %368 = vmatpush1.bf16.msra.mxu0 %v261
  %369 = vmatprep.subr.bf16.mxu0 0
  %370 = vmatpush1.bf16.msra.mxu0 %v262
  %371 = vmatprep.subr.bf16.mxu0 0
  %372 = vmatpush1.bf16.msra.mxu0 %v365
  %373 = vmatprep.subr.bf16.mxu0 0
  %374 = vmatpush1.bf16.msra.mxu0 0
  %375 = vmatprep.subr.bf16.mxu0 0
  %376 = vmatpush1.bf16.msra.mxu0 0
  %377 = vmatprep.subr.bf16.mxu0 0
  %378 = vmatpush1.bf16.msra.mxu0 0
  %379 = vmatprep.subr.bf16.mxu0 0
  %380 = vmatpush1.bf16.msra.mxu0 0
  %381 = vmatprep.subr.bf16.mxu0 0
  %382 = vmatpush1.bf16.msra.mxu0 0
  %383 = vmatprep.subr.bf16.mxu0 0
  %384 = vmatpush1.bf16.msra.mxu0 0
  %385 = vmatprep.subr.bf16.mxu0 0
  %386 = vmatpush1.bf16.msra.mxu0 0
  %387 = vmatprep.subr.bf16.mxu0 0
  %388 = vmatpush1.bf16.msra.mxu0 0
  %389 = vmatprep.subr.bf16.mxu0 0
  %390 = vmatpush1.bf16.msra.mxu0 0
  %391 = vmatprep.subr.bf16.mxu0 0
  %392 = vmatpush1.bf16.msra.mxu0 0
  %393 = vmatprep.subr.bf16.mxu0 0
  %394 = vmatpush1.bf16.msra.mxu0 0
  %395 = vmatprep.subr.bf16.mxu0 0
  %396 = vmatpush1.bf16.msra.mxu0 0
  %397 = vmatprep.subr.bf16.mxu0 0
  %398 = vmatpush1.bf16.msra.mxu0 0
  %399 = vmatprep.mubr.bf16.mxu0 0
  %400 = vmatmul.mubr.bf16.gmra.mrb[0].mxu0 %v268
  %v401 = vpop.f32.mrb[0].mxu0
  %v402 = vadd.f32 %v89, %v401
  %v403 = vpop.f32.mrb[0].mxu0
  %v404 = vpop.f32.mrb[0].mxu0
  %v405 = vadd.f32 %v89, %v404
  %v406 = vpop.f32.mrb[0].mxu0
  %407 = vmatprep.mubr.bf16.mxu0 0
  %408 = vmatmul.mubr.bf16.gmra.mrb[0].mxu0 %v271
  %v409 = vpop.f32.mrb[0].mxu0
  %v410 = vadd.f32 %v89, %v409
  %v411 = vpop.f32.mrb[0].mxu0
  %v412 = vpop.f32.mrb[0].mxu0
  %v413 = vadd.f32 %v89, %v412
  %v414 = vpop.f32.mrb[0].mxu0
  %415 = vmatprep.mubr.bf16.mxu0 0
  %416 = vmatmul.mubr.bf16.gmra.mrb[0].mxu0 %v274
  %v417 = vpop.f32.mrb[0].mxu0
  %v418 = vadd.f32 %v89, %v417
  %v419 = vpop.f32.mrb[0].mxu0
  %v420 = vpop.f32.mrb[0].mxu0
  %v421 = vadd.f32 %v89, %v420
  %v422 = vpop.f32.mrb[0].mxu0
  %423 = vmatprep.mubr.bf16.mxu0 0
  %424 = vmatmul.mubr.bf16.gmra.mrb[0].mxu0 %v277
  %v425 = vpop.f32.mrb[0].mxu0
  %v426 = vadd.f32 %v89, %v425
  %v427 = vpop.f32.mrb[0].mxu0
  %v428 = vpop.f32.mrb[0].mxu0
  %v429 = vadd.f32 %v89, %v428
  %v430 = vpop.f32.mrb[0].mxu0
  %431 = vmatprep.mubr.bf16.mxu0 0
  %432 = vmatmul.mubr.bf16.gmra.mrb[0].mxu0 %v280
  %v433 = vpop.f32.mrb[0].mxu0
  %v434 = vadd.f32 %v89, %v433
  %v435 = vpop.f32.mrb[0].mxu0
  %v436 = vpop.f32.mrb[0].mxu0
  %v437 = vadd.f32 %v89, %v436
  %v438 = vpop.f32.mrb[0].mxu0
  %439 = vmatprep.mubr.bf16.mxu0 0
  %440 = vmatmul.mubr.bf16.gmra.mrb[0].mxu0 %v283
  %v441 = vpop.f32.mrb[0].mxu0
  %v442 = vadd.f32 %v89, %v441
  %v443 = vpop.f32.mrb[0].mxu0
  %v444 = vpop.f32.mrb[0].mxu0
  %v445 = vadd.f32 %v89, %v444
  %v446 = vpop.f32.mrb[0].mxu0
  %447 = vmatprep.mubr.bf16.mxu0 0
  %448 = vmatmul.mubr.bf16.gmra.mrb[0].mxu0 %v286
  %v449 = vpop.f32.mrb[0].mxu0
  %v450 = vadd.f32 %v89, %v449
  %v451 = vpop.f32.mrb[0].mxu0
  %v452 = vpop.f32.mrb[0].mxu0
  %v453 = vadd.f32 %v89, %v452
  %v454 = vpop.f32.mrb[0].mxu0
  %455 = vmatprep.mubr.bf16.mxu0 0
  %456 = vmatmul.mubr.bf16.gmra.mrb[0].mxu0 %v289
  %v457 = vpop.f32.mrb[0].mxu0
  %v458 = vadd.f32 %v89, %v457
  %v459 = vpop.f32.mrb[0].mxu0
  %v460 = vpop.f32.mrb[0].mxu0
  %v461 = vadd.f32 %v89, %v460
  %v462 = vpop.f32.mrb[0].mxu0
  %463 = vmatprep.mubr.bf16.mxu0 0
  %464 = vmatmul.mubr.bf16.gmra.mrb[0].mxu0 %v292
  %v465 = vpop.f32.mrb[0].mxu0
  %v466 = vadd.f32 %v89, %v465
  %v467 = vpop.f32.mrb[0].mxu0
  %v468 = vpop.f32.mrb[0].mxu0
  %v469 = vadd.f32 %v89, %v468
  %v470 = vpop.f32.mrb[0].mxu0
  %471 = vmatprep.mubr.bf16.mxu0 0
  %472 = vmatmul.mubr.bf16.gmra.mrb[0].mxu0 %v295
  %v473 = vpop.f32.mrb[0].mxu0
  %v474 = vadd.f32 %v89, %v473
  %v475 = vpop.f32.mrb[0].mxu0
  %v476 = vpop.f32.mrb[0].mxu0
  %v477 = vadd.f32 %v89, %v476
  %v478 = vpop.f32.mrb[0].mxu0
  %479 = vmatprep.mubr.bf16.mxu0 0
  %480 = vmatmul.mubr.bf16.gmra.mrb[0].mxu0 %v298
  %v481 = vpop.f32.mrb[0].mxu0
  %v482 = vadd.f32 %v89, %v481
  %v483 = vpop.f32.mrb[0].mxu0
  %v484 = vpop.f32.mrb[0].mxu0
  %v485 = vadd.f32 %v89, %v484
  %v486 = vpop.f32.mrb[0].mxu0
  %487 = vmatprep.mubr.bf16.mxu0 0
  %488 = vmatmul.mubr.bf16.gmra.mrb[0].mxu0 %v301
  %v489 = vpop.f32.mrb[0].mxu0
  %v490 = vadd.f32 %v89, %v489
  %v491 = vpop.f32.mrb[0].mxu0
  %v492 = vpop.f32.mrb[0].mxu0
  %v493 = vadd.f32 %v89, %v492
  %v494 = vpop.f32.mrb[0].mxu0
  %495 = vmatprep.mubr.bf16.mxu0 0
  %496 = vmatmul.mubr.bf16.gmra.mrb[0].mxu0 %v304
  %v497 = vpop.f32.mrb[0].mxu0
  %v498 = vadd.f32 %v89, %v497
  %v499 = vpop.f32.mrb[0].mxu0
  %v500 = vpop.f32.mrb[0].mxu0
  %v501 = vadd.f32 %v89, %v500
  %v502 = vpop.f32.mrb[0].mxu0
  %503 = vmatprep.mubr.bf16.mxu0 0
  %504 = vmatmul.mubr.bf16.gmra.mrb[0].mxu0 %v307
  %v505 = vpop.f32.mrb[0].mxu0
  %v506 = vadd.f32 %v89, %v505
  %v507 = vpop.f32.mrb[0].mxu0
  %v508 = vpop.f32.mrb[0].mxu0
  %v509 = vadd.f32 %v89, %v508
  %v510 = vpop.f32.mrb[0].mxu0
  %511 = vmatprep.mubr.bf16.mxu0 0
  %512 = vmatmul.mubr.bf16.gmra.mrb[0].mxu0 %v310
  %v513 = vpop.f32.mrb[0].mxu0
  %v514 = vadd.f32 %v89, %v513
  %v515 = vpop.f32.mrb[0].mxu0
  %v516 = vpop.f32.mrb[0].mxu0
  %v517 = vadd.f32 %v89, %v516
  %v518 = vpop.f32.mrb[0].mxu0
  %519 = vmatprep.mubr.bf16.mxu0 0
  %520 = vmatmul.mubr.bf16.gmra.mrb[0].mxu0 %v313
  %v521 = vpop.f32.mrb[0].mxu0
  %v522 = vadd.f32 %v89, %v521
  %v523 = vpop.f32.mrb[0].mxu0
  %v524 = vpop.f32.mrb[0].mxu0
  %v525 = vadd.f32 %v89, %v524
  %v526 = vpop.f32.mrb[0].mxu0
  %527 = vmatprep.mubr.bf16.mxu0 0
  %528 = vmatmul.mubr.bf16.gmra.mrb[0].mxu0 %v316
  %v529 = vpop.f32.mrb[0].mxu0
  %v530 = vadd.f32 %v89, %v529
  %v531 = vpop.f32.mrb[0].mxu0
  %v532 = vpop.f32.mrb[0].mxu0
  %v533 = vadd.f32 %v89, %v532
  %v534 = vpop.f32.mrb[0].mxu0
  %535 = vmatprep.mubr.bf16.mxu0 0
  %536 = vmatmul.mubr.bf16.gmra.mrb[0].mxu0 %v319
  %v537 = vpop.f32.mrb[0].mxu0
  %v538 = vadd.f32 %v89, %v537
  %v539 = vpop.f32.mrb[0].mxu0
  %v540 = vpop.f32.mrb[0].mxu0
  %v541 = vadd.f32 %v89, %v540
  %v542 = vpop.f32.mrb[0].mxu0
  %543 = vmatprep.mubr.bf16.mxu0 0
  %544 = vmatmul.mubr.bf16.gmra.mrb[0].mxu0 %v322
  %v545 = vpop.f32.mrb[0].mxu0
  %v546 = vadd.f32 %v89, %v545
  %v547 = vpop.f32.mrb[0].mxu0
  %v548 = vpop.f32.mrb[0].mxu0
  %v549 = vadd.f32 %v89, %v548
  %v550 = vpop.f32.mrb[0].mxu0
  %551 = vmatprep.mubr.bf16.mxu0 0
  %552 = vmatmul.mubr.bf16.gmra.mrb[0].mxu0 %v325
  %v553 = vpop.f32.mrb[0].mxu0
  %v554 = vadd.f32 %v89, %v553
  %v555 = vpop.f32.mrb[0].mxu0
  %v556 = vpop.f32.mrb[0].mxu0
  %v557 = vadd.f32 %v89, %v556
  %v558 = vpop.f32.mrb[0].mxu0
  %559 = vmatprep.mubr.bf16.mxu0 0
  %560 = vmatmul.mubr.bf16.gmra.mrb[0].mxu0 %v328
  %v561 = vpop.f32.mrb[0].mxu0
  %v562 = vadd.f32 %v89, %v561
  %v563 = vpop.f32.mrb[0].mxu0
  %v564 = vpop.f32.mrb[0].mxu0
  %v565 = vadd.f32 %v89, %v564
  %v566 = vpop.f32.mrb[0].mxu0
  %567 = vmatprep.mubr.bf16.mxu0 0
  %568 = vmatmul.mubr.bf16.gmra.mrb[0].mxu0 %v331
  %v569 = vpop.f32.mrb[0].mxu0
  %v570 = vadd.f32 %v89, %v569
  %v571 = vpop.f32.mrb[0].mxu0
  %v572 = vpop.f32.mrb[0].mxu0
  %v573 = vadd.f32 %v89, %v572
  %v574 = vpop.f32.mrb[0].mxu0
  %575 = vmatprep.mubr.bf16.mxu0 0
  %576 = vmatmul.mubr.bf16.gmra.mrb[0].mxu0 %v334
  %v577 = vpop.f32.mrb[0].mxu0
  %v578 = vadd.f32 %v89, %v577
  %v579 = vpop.f32.mrb[0].mxu0
  %v580 = vpop.f32.mrb[0].mxu0
  %v581 = vadd.f32 %v89, %v580
  %v582 = vpop.f32.mrb[0].mxu0
  %583 = vmatprep.mubr.bf16.mxu0 0
  %584 = vmatmul.mubr.bf16.gmra.mrb[0].mxu0 %v337
  %v585 = vpop.f32.mrb[0].mxu0
  %v586 = vadd.f32 %v89, %v585
  %v587 = vpop.f32.mrb[0].mxu0
  %v588 = vpop.f32.mrb[0].mxu0
  %v589 = vadd.f32 %v89, %v588
  %v590 = vpop.f32.mrb[0].mxu0
  %591 = vmatprep.mubr.bf16.mxu0 0
  %592 = vmatmul.mubr.bf16.gmra.mrb[0].mxu0 %v340
  %v593 = vpop.f32.mrb[0].mxu0
  %v594 = vadd.f32 %v89, %v593
  %v595 = vpop.f32.mrb[0].mxu0
  %v596 = vpop.f32.mrb[0].mxu0
  %v597 = vadd.f32 %v89, %v596
  %v598 = vpop.f32.mrb[0].mxu0
  %599 = vmatprep.mubr.bf16.mxu0 0
  %600 = vmatmul.mubr.bf16.gmra.mrb[0].mxu0 %v343
  %v601 = vpop.f32.mrb[0].mxu0
  %v602 = vadd.f32 %v89, %v601
  %v603 = vpop.f32.mrb[0].mxu0
  %v604 = vpop.f32.mrb[0].mxu0
  %v605 = vadd.f32 %v89, %v604
  %v606 = vpop.f32.mrb[0].mxu0
  %607 = vmatprep.mubr.bf16.mxu0 0
  %608 = vmatmul.mubr.bf16.gmra.mrb[0].mxu0 %v346
  %v609 = vpop.f32.mrb[0].mxu0
  %v610 = vadd.f32 %v89, %v609
  %v611 = vpop.f32.mrb[0].mxu0
  %v612 = vpop.f32.mrb[0].mxu0
  %v613 = vadd.f32 %v89, %v612
  %v614 = vpop.f32.mrb[0].mxu0
  %615 = vmatprep.mubr.bf16.mxu0 0
  %616 = vmatmul.mubr.bf16.gmra.mrb[0].mxu0 %v349
  %v617 = vpop.f32.mrb[0].mxu0
  %v618 = vadd.f32 %v89, %v617
  %v619 = vpop.f32.mrb[0].mxu0
  %v620 = vpop.f32.mrb[0].mxu0
  %v621 = vadd.f32 %v89, %v620
  %v622 = vpop.f32.mrb[0].mxu0
  %623 = vmatprep.mubr.bf16.mxu0 0
  %624 = vmatmul.mubr.bf16.gmra.mrb[0].mxu0 %v352
  %v625 = vpop.f32.mrb[0].mxu0
  %v626 = vadd.f32 %v89, %v625
  %v627 = vpop.f32.mrb[0].mxu0
  %v628 = vpop.f32.mrb[0].mxu0
  %v629 = vadd.f32 %v89, %v628
  %v630 = vpop.f32.mrb[0].mxu0
  %631 = vmatprep.mubr.bf16.mxu0 0
  %632 = vmatmul.mubr.bf16.gmra.mrb[0].mxu0 %v355
  %v633 = vpop.f32.mrb[0].mxu0
  %v634 = vadd.f32 %v89, %v633
  %v635 = vpop.f32.mrb[0].mxu0
  %v636 = vpop.f32.mrb[0].mxu0
  %v637 = vadd.f32 %v89, %v636
  %v638 = vpop.f32.mrb[0].mxu0
  %639 = vmatprep.mubr.bf16.mxu0 0
  %640 = vmatmul.mubr.bf16.gmra.mrb[0].mxu0 %v358
  %v641 = vpop.f32.mrb[0].mxu0
  %v642 = vadd.f32 %v89, %v641
  %v643 = vpop.f32.mrb[0].mxu0
  %v644 = vpop.f32.mrb[0].mxu0
  %v645 = vadd.f32 %v89, %v644
  %v646 = vpop.f32.mrb[0].mxu0
  %647 = vmatprep.mubr.bf16.mxu0 0
  %648 = vmatmul.mubr.bf16.gmra.mrb[0].mxu0 %v361
  %v649 = vpop.f32.mrb[0].mxu0
  %v650 = vadd.f32 %v89, %v649
  %v651 = vpop.f32.mrb[0].mxu0
  %v652 = vpop.f32.mrb[0].mxu0
  %v653 = vadd.f32 %v89, %v652
  %v654 = vpop.f32.mrb[0].mxu0
  %655 = vdwg.mxu0
  %v656 = vmin.f32 %v402, 20.0
  %v657 = vmin.f32 %v405, 20.0
  %v658 = vmin.f32 %v410, 20.0
  %v659 = vmin.f32 %v413, 20.0
  %v660 = vmin.f32 %v418, 20.0
  %v661 = vmin.f32 %v421, 20.0
  %v662 = vmin.f32 %v426, 20.0
  %v663 = vmin.f32 %v429, 20.0
  %v664 = vmin.f32 %v434, 20.0
  %v665 = vmin.f32 %v437, 20.0
  %v666 = vmin.f32 %v442, 20.0
  %v667 = vmin.f32 %v445, 20.0
  %v668 = vmin.f32 %v450, 20.0
  %v669 = vmin.f32 %v453, 20.0
  %v670 = vmin.f32 %v458, 20.0
  %v671 = vmin.f32 %v461, 20.0
  %v672 = vmin.f32 %v466, 20.0
  %v673 = vmin.f32 %v469, 20.0
  %v674 = vmin.f32 %v474, 20.0
  %v675 = vmin.f32 %v477, 20.0
  %v676 = vmin.f32 %v482, 20.0
  %v677 = vmin.f32 %v485, 20.0
  %v678 = vmin.f32 %v490, 20.0
  %v679 = vmin.f32 %v493, 20.0
  %v680 = vmin.f32 %v498, 20.0
  %v681 = vmin.f32 %v501, 20.0
  %v682 = vmin.f32 %v506, 20.0
  %v683 = vmin.f32 %v509, 20.0
  %v684 = vmin.f32 %v514, 20.0
  %v685 = vmin.f32 %v517, 20.0
  %v686 = vmin.f32 %v522, 20.0
  %v687 = vmin.f32 %v525, 20.0
  %v688 = vmin.f32 %v530, 20.0
  %v689 = vmin.f32 %v533, 20.0
  %v690 = vmin.f32 %v538, 20.0
  %v691 = vmin.f32 %v541, 20.0
  %v692 = vmin.f32 %v546, 20.0
  %v693 = vmin.f32 %v549, 20.0
  %v694 = vmin.f32 %v554, 20.0
  %v695 = vmin.f32 %v557, 20.0
  %v696 = vmin.f32 %v562, 20.0
  %v697 = vmin.f32 %v565, 20.0
  %v698 = vmin.f32 %v570, 20.0
  %v699 = vmin.f32 %v573, 20.0
  %v700 = vmin.f32 %v578, 20.0
  %v701 = vmin.f32 %v581, 20.0
  %v702 = vmin.f32 %v586, 20.0
  %v703 = vmin.f32 %v589, 20.0
  %v704 = vmin.f32 %v594, 20.0
  %v705 = vmin.f32 %v597, 20.0
  %v706 = vmin.f32 %v602, 20.0
  %v707 = vmin.f32 %v605, 20.0
  %v708 = vmin.f32 %v610, 20.0
  %v709 = vmin.f32 %v613, 20.0
  %v710 = vmin.f32 %v618, 20.0
  %v711 = vmin.f32 %v621, 20.0
  %v712 = vmin.f32 %v626, 20.0
  %v713 = vmin.f32 %v629, 20.0
  %v714 = vmin.f32 %v634, 20.0
  %v715 = vmin.f32 %v637, 20.0
  %v716 = vmin.f32 %v642, 20.0
  %v717 = vmin.f32 %v645, 20.0
  %v718 = vmin.f32 %v650, 20.0
  %v719 = vmin.f32 %v653, 20.0
  %v720 = vmul.f32 %v656, 1.442695
  %v721 = vpow.pop %v720
  %v722 = vmul.f32 %v657, 1.442695
  %v723 = vpow.pop %v722
  %v724 = vmul.f32 %v658, 1.442695
  %v725 = vpow.pop %v724
  %v726 = vmul.f32 %v659, 1.442695
  %v727 = vpow.pop %v726
  %v728 = vmul.f32 %v660, 1.442695
  %v729 = vpow.pop %v728
  %v730 = vmul.f32 %v661, 1.442695
  %v731 = vpow.pop %v730
  %v732 = vmul.f32 %v662, 1.442695
  %v733 = vpow.pop %v732
  %v734 = vmul.f32 %v663, 1.442695
  %v735 = vpow.pop %v734
  %v736 = vmul.f32 %v664, 1.442695
  %v737 = vpow.pop %v736
  %v738 = vmul.f32 %v665, 1.442695
  %v739 = vpow.pop %v738
  %v740 = vmul.f32 %v666, 1.442695
  %v741 = vpow.pop %v740
  %v742 = vmul.f32 %v667, 1.442695
  %v743 = vpow.pop %v742
  %v744 = vmul.f32 %v668, 1.442695
  %v745 = vpow.pop %v744
  %v746 = vmul.f32 %v669, 1.442695
  %v747 = vpow.pop %v746
  %v748 = vmul.f32 %v670, 1.442695
  %v749 = vpow.pop %v748
  %v750 = vmul.f32 %v671, 1.442695
  %v751 = vpow.pop %v750
  %v752 = vmul.f32 %v672, 1.442695
  %v753 = vpow.pop %v752
  %v754 = vmul.f32 %v673, 1.442695
  %v755 = vpow.pop %v754
  %v756 = vmul.f32 %v674, 1.442695
  %v757 = vpow.pop %v756
  %v758 = vmul.f32 %v675, 1.442695
  %v759 = vpow.pop %v758
  %v760 = vmul.f32 %v676, 1.442695
  %v761 = vpow.pop %v760
  %v762 = vmul.f32 %v677, 1.442695
  %v763 = vpow.pop %v762
  %v764 = vmul.f32 %v678, 1.442695
  %v765 = vpow.pop %v764
  %v766 = vmul.f32 %v679, 1.442695
  %v767 = vpow.pop %v766
  %v768 = vmul.f32 %v680, 1.442695
  %v769 = vpow.pop %v768
  %v770 = vmul.f32 %v681, 1.442695
  %v771 = vpow.pop %v770
  %v772 = vmul.f32 %v682, 1.442695
  %v773 = vpow.pop %v772
  %v774 = vmul.f32 %v683, 1.442695
  %v775 = vpow.pop %v774
  %v776 = vmul.f32 %v684, 1.442695
  %v777 = vpow.pop %v776
  %v778 = vmul.f32 %v685, 1.442695
  %v779 = vpow.pop %v778
  %v780 = vmul.f32 %v686, 1.442695
  %v781 = vpow.pop %v780
  %v782 = vmul.f32 %v687, 1.442695
  %v783 = vpow.pop %v782
  %v784 = vmul.f32 %v688, 1.442695
  %v785 = vpow.pop %v784
  %v786 = vmul.f32 %v689, 1.442695
  %v787 = vpow.pop %v786
  %v788 = vmul.f32 %v690, 1.442695
  %v789 = vpow.pop %v788
  %v790 = vmul.f32 %v691, 1.442695
  %v791 = vpow.pop %v790
  %v792 = vmul.f32 %v692, 1.442695
  %v793 = vpow.pop %v792
  %v794 = vmul.f32 %v693, 1.442695
  %v795 = vpow.pop %v794
  %v796 = vmul.f32 %v694, 1.442695
  %v797 = vpow.pop %v796
  %v798 = vmul.f32 %v695, 1.442695
  %v799 = vpow.pop %v798
  %v800 = vmul.f32 %v696, 1.442695
  %v801 = vpow.pop %v800
  %v802 = vmul.f32 %v697, 1.442695
  %v803 = vpow.pop %v802
  %v804 = vmul.f32 %v698, 1.442695
  %v805 = vpow.pop %v804
  %v806 = vmul.f32 %v699, 1.442695
  %v807 = vpow.pop %v806
  %v808 = vmul.f32 %v700, 1.442695
  %v809 = vpow.pop %v808
  %v810 = vmul.f32 %v701, 1.442695
  %v811 = vpow.pop %v810
  %v812 = vmul.f32 %v702, 1.442695
  %v813 = vpow.pop %v812
  %v814 = vmul.f32 %v703, 1.442695
  %v815 = vpow.pop %v814
  %v816 = vmul.f32 %v704, 1.442695
  %v817 = vpow.pop %v816
  %v818 = vmul.f32 %v705, 1.442695
  %v819 = vpow.pop %v818
  %v820 = vmul.f32 %v706, 1.442695
  %v821 = vpow.pop %v820
  %v822 = vmul.f32 %v707, 1.442695
  %v823 = vpow.pop %v822
  %v824 = vmul.f32 %v708, 1.442695
  %v825 = vpow.pop %v824
  %v826 = vmul.f32 %v709, 1.442695
  %v827 = vpow.pop %v826
  %v828 = vmul.f32 %v710, 1.442695
  %v829 = vpow.pop %v828
  %v830 = vmul.f32 %v711, 1.442695
  %v831 = vpow.pop %v830
  %v832 = vmul.f32 %v712, 1.442695
  %v833 = vpow.pop %v832
  %v834 = vmul.f32 %v713, 1.442695
  %v835 = vpow.pop %v834
  %v836 = vmul.f32 %v714, 1.442695
  %v837 = vpow.pop %v836
  %v838 = vmul.f32 %v715, 1.442695
  %v839 = vpow.pop %v838
  %v840 = vmul.f32 %v716, 1.442695
  %v841 = vpow.pop %v840
  %v842 = vmul.f32 %v717, 1.442695
  %v843 = vpow.pop %v842
  %v844 = vmul.f32 %v718, 1.442695
  %v845 = vpow.pop %v844
  %v846 = vmul.f32 %v719, 1.442695
  %v847 = vpow.pop %v846
  %v848 = vadd.f32 %v721, 2.0
  %v849 = vadd.f32 %v723, 2.0
  %v850 = vadd.f32 %v725, 2.0
  %v851 = vadd.f32 %v727, 2.0
  %v852 = vadd.f32 %v729, 2.0
  %v853 = vadd.f32 %v731, 2.0
  %v854 = vadd.f32 %v733, 2.0
  %v855 = vadd.f32 %v735, 2.0
  %v856 = vadd.f32 %v737, 2.0
  %v857 = vadd.f32 %v739, 2.0
  %v858 = vadd.f32 %v741, 2.0
  %v859 = vadd.f32 %v743, 2.0
  %v860 = vadd.f32 %v745, 2.0
  %v861 = vadd.f32 %v747, 2.0
  %v862 = vadd.f32 %v749, 2.0
  %v863 = vadd.f32 %v751, 2.0
  %v864 = vadd.f32 %v753, 2.0
  %v865 = vadd.f32 %v755, 2.0
  %v866 = vadd.f32 %v757, 2.0
  %v867 = vadd.f32 %v759, 2.0
  %v868 = vadd.f32 %v761, 2.0
  %v869 = vadd.f32 %v763, 2.0
  %v870 = vadd.f32 %v765, 2.0
  %v871 = vadd.f32 %v767, 2.0
  %v872 = vadd.f32 %v769, 2.0
  %v873 = vadd.f32 %v771, 2.0
  %v874 = vadd.f32 %v773, 2.0
  %v875 = vadd.f32 %v775, 2.0
  %v876 = vadd.f32 %v777, 2.0
  %v877 = vadd.f32 %v779, 2.0
  %v878 = vadd.f32 %v781, 2.0
  %v879 = vadd.f32 %v783, 2.0
  %v880 = vadd.f32 %v785, 2.0
  %v881 = vadd.f32 %v787, 2.0
  %v882 = vadd.f32 %v789, 2.0
  %v883 = vadd.f32 %v791, 2.0
  %v884 = vadd.f32 %v793, 2.0
  %v885 = vadd.f32 %v795, 2.0
  %v886 = vadd.f32 %v797, 2.0
  %v887 = vadd.f32 %v799, 2.0
  %v888 = vadd.f32 %v801, 2.0
  %v889 = vadd.f32 %v803, 2.0
  %v890 = vadd.f32 %v805, 2.0
  %v891 = vadd.f32 %v807, 2.0
  %v892 = vadd.f32 %v809, 2.0
  %v893 = vadd.f32 %v811, 2.0
  %v894 = vadd.f32 %v813, 2.0
  %v895 = vadd.f32 %v815, 2.0
  %v896 = vadd.f32 %v817, 2.0
  %v897 = vadd.f32 %v819, 2.0
  %v898 = vadd.f32 %v821, 2.0
  %v899 = vadd.f32 %v823, 2.0
  %v900 = vadd.f32 %v825, 2.0
  %v901 = vadd.f32 %v827, 2.0
  %v902 = vadd.f32 %v829, 2.0
  %v903 = vadd.f32 %v831, 2.0
  %v904 = vadd.f32 %v833, 2.0
  %v905 = vadd.f32 %v835, 2.0
  %v906 = vadd.f32 %v837, 2.0
  %v907 = vadd.f32 %v839, 2.0
  %v908 = vadd.f32 %v841, 2.0
  %v909 = vadd.f32 %v843, 2.0
  %v910 = vadd.f32 %v845, 2.0
  %v911 = vadd.f32 %v847, 2.0
  %v912 = vmul.f32 %v721, %v848
  %v913 = vmul.f32 %v723, %v849
  %v914 = vmul.f32 %v725, %v850
  %v915 = vmul.f32 %v727, %v851
  %v916 = vmul.f32 %v729, %v852
  %v917 = vmul.f32 %v731, %v853
  %v918 = vmul.f32 %v733, %v854
  %v919 = vmul.f32 %v735, %v855
  %v920 = vmul.f32 %v737, %v856
  %v921 = vmul.f32 %v739, %v857
  %v922 = vmul.f32 %v741, %v858
  %v923 = vmul.f32 %v743, %v859
  %v924 = vmul.f32 %v745, %v860
  %v925 = vmul.f32 %v747, %v861
  %v926 = vmul.f32 %v749, %v862
  %v927 = vmul.f32 %v751, %v863
  %v928 = vmul.f32 %v753, %v864
  %v929 = vmul.f32 %v755, %v865
  %v930 = vmul.f32 %v757, %v866
  %v931 = vmul.f32 %v759, %v867
  %v932 = vmul.f32 %v761, %v868
  %v933 = vmul.f32 %v763, %v869
  %v934 = vmul.f32 %v765, %v870
  %v935 = vmul.f32 %v767, %v871
  %v936 = vmul.f32 %v769, %v872
  %v937 = vmul.f32 %v771, %v873
  %v938 = vmul.f32 %v773, %v874
  %v939 = vmul.f32 %v775, %v875
  %v940 = vmul.f32 %v777, %v876
  %v941 = vmul.f32 %v779, %v877
  %v942 = vmul.f32 %v781, %v878
  %v943 = vmul.f32 %v783, %v879
  %v944 = vmul.f32 %v785, %v880
  %v945 = vmul.f32 %v787, %v881
  %v946 = vmul.f32 %v789, %v882
  %v947 = vmul.f32 %v791, %v883
  %v948 = vmul.f32 %v793, %v884
  %v949 = vmul.f32 %v795, %v885
  %v950 = vmul.f32 %v797, %v886
  %v951 = vmul.f32 %v799, %v887
  %v952 = vmul.f32 %v801, %v888
  %v953 = vmul.f32 %v803, %v889
  %v954 = vmul.f32 %v805, %v890
  %v955 = vmul.f32 %v807, %v891
  %v956 = vmul.f32 %v809, %v892
  %v957 = vmul.f32 %v811, %v893
  %v958 = vmul.f32 %v813, %v894
  %v959 = vmul.f32 %v815, %v895
  %v960 = vmul.f32 %v817, %v896
  %v961 = vmul.f32 %v819, %v897
  %v962 = vmul.f32 %v821, %v898
  %v963 = vmul.f32 %v823, %v899
  %v964 = vmul.f32 %v825, %v900
  %v965 = vmul.f32 %v827, %v901
  %v966 = vmul.f32 %v829, %v902
  %v967 = vmul.f32 %v831, %v903
  %v968 = vmul.f32 %v833, %v904
  %v969 = vmul.f32 %v835, %v905
  %v970 = vmul.f32 %v837, %v906
  %v971 = vmul.f32 %v839, %v907
  %v972 = vmul.f32 %v841, %v908
  %v973 = vmul.f32 %v843, %v909
  %v974 = vmul.f32 %v845, %v910
  %v975 = vmul.f32 %v847, %v911
  %v976 = vadd.f32 %v912, 2.0
  %v977 = vadd.f32 %v913, 2.0
  %v978 = vadd.f32 %v914, 2.0
  %v979 = vadd.f32 %v915, 2.0
  %v980 = vadd.f32 %v916, 2.0
  %v981 = vadd.f32 %v917, 2.0
  %v982 = vadd.f32 %v918, 2.0
  %v983 = vadd.f32 %v919, 2.0
  %v984 = vadd.f32 %v920, 2.0
  %v985 = vadd.f32 %v921, 2.0
  %v986 = vadd.f32 %v922, 2.0
  %v987 = vadd.f32 %v923, 2.0
  %v988 = vadd.f32 %v924, 2.0
  %v989 = vadd.f32 %v925, 2.0
  %v990 = vadd.f32 %v926, 2.0
  %v991 = vadd.f32 %v927, 2.0
  %v992 = vadd.f32 %v928, 2.0
  %v993 = vadd.f32 %v929, 2.0
  %v994 = vadd.f32 %v930, 2.0
  %v995 = vadd.f32 %v931, 2.0
  %v996 = vadd.f32 %v932, 2.0
  %v997 = vadd.f32 %v933, 2.0
  %v998 = vadd.f32 %v934, 2.0
  %v999 = vadd.f32 %v935, 2.0
  %v1000 = vadd.f32 %v936, 2.0
  %v1001 = vadd.f32 %v937, 2.0
  %v1002 = vadd.f32 %v938, 2.0
  %v1003 = vadd.f32 %v939, 2.0
  %v1004 = vadd.f32 %v940, 2.0
  %v1005 = vadd.f32 %v941, 2.0
  %v1006 = vadd.f32 %v942, 2.0
  %v1007 = vadd.f32 %v943, 2.0
  %v1008 = vadd.f32 %v944, 2.0
  %v1009 = vadd.f32 %v945, 2.0
  %v1010 = vadd.f32 %v946, 2.0
  %v1011 = vadd.f32 %v947, 2.0
  %v1012 = vadd.f32 %v948, 2.0
  %v1013 = vadd.f32 %v949, 2.0
  %v1014 = vadd.f32 %v950, 2.0
  %v1015 = vadd.f32 %v951, 2.0
  %v1016 = vadd.f32 %v952, 2.0
  %v1017 = vadd.f32 %v953, 2.0
  %v1018 = vadd.f32 %v954, 2.0
  %v1019 = vadd.f32 %v955, 2.0
  %v1020 = vadd.f32 %v956, 2.0
  %v1021 = vadd.f32 %v957, 2.0
  %v1022 = vadd.f32 %v958, 2.0
  %v1023 = vadd.f32 %v959, 2.0
  %v1024 = vadd.f32 %v960, 2.0
  %v1025 = vadd.f32 %v961, 2.0
  %v1026 = vadd.f32 %v962, 2.0
  %v1027 = vadd.f32 %v963, 2.0
  %v1028 = vadd.f32 %v964, 2.0
  %v1029 = vadd.f32 %v965, 2.0
  %v1030 = vadd.f32 %v966, 2.0
  %v1031 = vadd.f32 %v967, 2.0
  %v1032 = vadd.f32 %v968, 2.0
  %v1033 = vadd.f32 %v969, 2.0
  %v1034 = vadd.f32 %v970, 2.0
  %v1035 = vadd.f32 %v971, 2.0
  %v1036 = vadd.f32 %v972, 2.0
  %v1037 = vadd.f32 %v973, 2.0
  %v1038 = vadd.f32 %v974, 2.0
  %v1039 = vadd.f32 %v975, 2.0
  %v1040 = vrcp.pop %v976
  %v1041 = vrcp.pop %v977
  %v1042 = vrcp.pop %v978
  %v1043 = vrcp.pop %v979
  %v1044 = vrcp.pop %v980
  %v1045 = vrcp.pop %v981
  %v1046 = vrcp.pop %v982
  %v1047 = vrcp.pop %v983
  %v1048 = vrcp.pop %v984
  %v1049 = vrcp.pop %v985
  %v1050 = vrcp.pop %v986
  %v1051 = vrcp.pop %v987
  %v1052 = vrcp.pop %v988
  %v1053 = vrcp.pop %v989
  %v1054 = vrcp.pop %v990
  %v1055 = vrcp.pop %v991
  %v1056 = vrcp.pop %v992
  %v1057 = vrcp.pop %v993
  %v1058 = vrcp.pop %v994
  %v1059 = vrcp.pop %v995
  %v1060 = vrcp.pop %v996
  %v1061 = vrcp.pop %v997
  %v1062 = vrcp.pop %v998
  %v1063 = vrcp.pop %v999
  %v1064 = vrcp.pop %v1000
  %v1065 = vrcp.pop %v1001
  %v1066 = vrcp.pop %v1002
  %v1067 = vrcp.pop %v1003
  %v1068 = vrcp.pop %v1004
  %v1069 = vrcp.pop %v1005
  %v1070 = vrcp.pop %v1006
  %v1071 = vrcp.pop %v1007
  %v1072 = vrcp.pop %v1008
  %v1073 = vrcp.pop %v1009
  %v1074 = vrcp.pop %v1010
  %v1075 = vrcp.pop %v1011
  %v1076 = vrcp.pop %v1012
  %v1077 = vrcp.pop %v1013
  %v1078 = vrcp.pop %v1014
  %v1079 = vrcp.pop %v1015
  %v1080 = vrcp.pop %v1016
  %v1081 = vrcp.pop %v1017
  %v1082 = vrcp.pop %v1018
  %v1083 = vrcp.pop %v1019
  %v1084 = vrcp.pop %v1020
  %v1085 = vrcp.pop %v1021
  %v1086 = vrcp.pop %v1022
  %v1087 = vrcp.pop %v1023
  %v1088 = vrcp.pop %v1024
  %v1089 = vrcp.pop %v1025
  %v1090 = vrcp.pop %v1026
  %v1091 = vrcp.pop %v1027
  %v1092 = vrcp.pop %v1028
  %v1093 = vrcp.pop %v1029
  %v1094 = vrcp.pop %v1030
  %v1095 = vrcp.pop %v1031
  %v1096 = vrcp.pop %v1032
  %v1097 = vrcp.pop %v1033
  %v1098 = vrcp.pop %v1034
  %v1099 = vrcp.pop %v1035
  %v1100 = vrcp.pop %v1036
  %v1101 = vrcp.pop %v1037
  %v1102 = vrcp.pop %v1038
  %v1103 = vrcp.pop %v1039
  %v1104 = vmul.f32 %v912, %v1040
  %v1105 = vmul.f32 %v913, %v1041
  %v1106 = vmul.f32 %v914, %v1042
  %v1107 = vmul.f32 %v915, %v1043
  %v1108 = vmul.f32 %v916, %v1044
  %v1109 = vmul.f32 %v917, %v1045
  %v1110 = vmul.f32 %v918, %v1046
  %v1111 = vmul.f32 %v919, %v1047
  %v1112 = vmul.f32 %v920, %v1048
  %v1113 = vmul.f32 %v921, %v1049
  %v1114 = vmul.f32 %v922, %v1050
  %v1115 = vmul.f32 %v923, %v1051
  %v1116 = vmul.f32 %v924, %v1052
  %v1117 = vmul.f32 %v925, %v1053
  %v1118 = vmul.f32 %v926, %v1054
  %v1119 = vmul.f32 %v927, %v1055
  %v1120 = vmul.f32 %v928, %v1056
  %v1121 = vmul.f32 %v929, %v1057
  %v1122 = vmul.f32 %v930, %v1058
  %v1123 = vmul.f32 %v931, %v1059
  %v1124 = vmul.f32 %v932, %v1060
  %v1125 = vmul.f32 %v933, %v1061
  %v1126 = vmul.f32 %v934, %v1062
  %v1127 = vmul.f32 %v935, %v1063
  %v1128 = vmul.f32 %v936, %v1064
  %v1129 = vmul.f32 %v937, %v1065
  %v1130 = vmul.f32 %v938, %v1066
  %v1131 = vmul.f32 %v939, %v1067
  %v1132 = vmul.f32 %v940, %v1068
  %v1133 = vmul.f32 %v941, %v1069
  %v1134 = vmul.f32 %v942, %v1070
  %v1135 = vmul.f32 %v943, %v1071
  %v1136 = vmul.f32 %v944, %v1072
  %v1137 = vmul.f32 %v945, %v1073
  %v1138 = vmul.f32 %v946, %v1074
  %v1139 = vmul.f32 %v947, %v1075
  %v1140 = vmul.f32 %v948, %v1076
  %v1141 = vmul.f32 %v949, %v1077
  %v1142 = vmul.f32 %v950, %v1078
  %v1143 = vmul.f32 %v951, %v1079
  %v1144 = vmul.f32 %v952, %v1080
  %v1145 = vmul.f32 %v953, %v1081
  %v1146 = vmul.f32 %v954, %v1082
  %v1147 = vmul.f32 %v955, %v1083
  %v1148 = vmul.f32 %v956, %v1084
  %v1149 = vmul.f32 %v957, %v1085
  %v1150 = vmul.f32 %v958, %v1086
  %v1151 = vmul.f32 %v959, %v1087
  %v1152 = vmul.f32 %v960, %v1088
  %v1153 = vmul.f32 %v961, %v1089
  %v1154 = vmul.f32 %v962, %v1090
  %v1155 = vmul.f32 %v963, %v1091
  %v1156 = vmul.f32 %v964, %v1092
  %v1157 = vmul.f32 %v965, %v1093
  %v1158 = vmul.f32 %v966, %v1094
  %v1159 = vmul.f32 %v967, %v1095
  %v1160 = vmul.f32 %v968, %v1096
  %v1161 = vmul.f32 %v969, %v1097
  %v1162 = vmul.f32 %v970, %v1098
  %v1163 = vmul.f32 %v971, %v1099
  %v1164 = vmul.f32 %v972, %v1100
  %v1165 = vmul.f32 %v973, %v1101
  %v1166 = vmul.f32 %v974, %v1102
  %v1167 = vmul.f32 %v975, %v1103
  %vm1168 = vcmp.gt.f32.partialorder %v402, 20.0
  %vm1169 = vcmp.gt.f32.partialorder %v405, 20.0
  %vm1170 = vcmp.gt.f32.partialorder %v410, 20.0
  %vm1171 = vcmp.gt.f32.partialorder %v413, 20.0
  %vm1172 = vcmp.gt.f32.partialorder %v418, 20.0
  %vm1173 = vcmp.gt.f32.partialorder %v421, 20.0
  %vm1174 = vcmp.gt.f32.partialorder %v426, 20.0
  %vm1175 = vcmp.gt.f32.partialorder %v429, 20.0
  %vm1176 = vcmp.gt.f32.partialorder %v434, 20.0
  %vm1177 = vcmp.gt.f32.partialorder %v437, 20.0
  %vm1178 = vcmp.gt.f32.partialorder %v442, 20.0
  %vm1179 = vcmp.gt.f32.partialorder %v445, 20.0
  %vm1180 = vcmp.gt.f32.partialorder %v450, 20.0
  %vm1181 = vcmp.gt.f32.partialorder %v453, 20.0
  %vm1182 = vcmp.gt.f32.partialorder %v458, 20.0
  %vm1183 = vcmp.gt.f32.partialorder %v461, 20.0
  %vm1184 = vcmp.gt.f32.partialorder %v466, 20.0
  %vm1185 = vcmp.gt.f32.partialorder %v469, 20.0
  %vm1186 = vcmp.gt.f32.partialorder %v474, 20.0
  %vm1187 = vcmp.gt.f32.partialorder %v477, 20.0
  %vm1188 = vcmp.gt.f32.partialorder %v482, 20.0
  %vm1189 = vcmp.gt.f32.partialorder %v485, 20.0
  %vm1190 = vcmp.gt.f32.partialorder %v490, 20.0
  %vm1191 = vcmp.gt.f32.partialorder %v493, 20.0
  %vm1192 = vcmp.gt.f32.partialorder %v498, 20.0
  %vm1193 = vcmp.gt.f32.partialorder %v501, 20.0
  %vm1194 = vcmp.gt.f32.partialorder %v506, 20.0
  %vm1195 = vcmp.gt.f32.partialorder %v509, 20.0
  %vm1196 = vcmp.gt.f32.partialorder %v514, 20.0
  %vm1197 = vcmp.gt.f32.partialorder %v517, 20.0
  %vm1198 = vcmp.gt.f32.partialorder %v522, 20.0
  %vm1199 = vcmp.gt.f32.partialorder %v525, 20.0
  %vm1200 = vcmp.gt.f32.partialorder %v530, 20.0
  %vm1201 = vcmp.gt.f32.partialorder %v533, 20.0
  %vm1202 = vcmp.gt.f32.partialorder %v538, 20.0
  %vm1203 = vcmp.gt.f32.partialorder %v541, 20.0
  %vm1204 = vcmp.gt.f32.partialorder %v546, 20.0
  %vm1205 = vcmp.gt.f32.partialorder %v549, 20.0
  %vm1206 = vcmp.gt.f32.partialorder %v554, 20.0
  %vm1207 = vcmp.gt.f32.partialorder %v557, 20.0
  %vm1208 = vcmp.gt.f32.partialorder %v562, 20.0
  %vm1209 = vcmp.gt.f32.partialorder %v565, 20.0
  %vm1210 = vcmp.gt.f32.partialorder %v570, 20.0
  %vm1211 = vcmp.gt.f32.partialorder %v573, 20.0
  %vm1212 = vcmp.gt.f32.partialorder %v578, 20.0
  %vm1213 = vcmp.gt.f32.partialorder %v581, 20.0
  %vm1214 = vcmp.gt.f32.partialorder %v586, 20.0
  %vm1215 = vcmp.gt.f32.partialorder %v589, 20.0
  %vm1216 = vcmp.gt.f32.partialorder %v594, 20.0
  %vm1217 = vcmp.gt.f32.partialorder %v597, 20.0
  %vm1218 = vcmp.gt.f32.partialorder %v602, 20.0
  %vm1219 = vcmp.gt.f32.partialorder %v605, 20.0
  %vm1220 = vcmp.gt.f32.partialorder %v610, 20.0
  %vm1221 = vcmp.gt.f32.partialorder %v613, 20.0
  %vm1222 = vcmp.gt.f32.partialorder %v618, 20.0
  %vm1223 = vcmp.gt.f32.partialorder %v621, 20.0
  %vm1224 = vcmp.gt.f32.partialorder %v626, 20.0
  %vm1225 = vcmp.gt.f32.partialorder %v629, 20.0
  %vm1226 = vcmp.gt.f32.partialorder %v634, 20.0
  %vm1227 = vcmp.gt.f32.partialorder %v637, 20.0
  %vm1228 = vcmp.gt.f32.partialorder %v642, 20.0
  %vm1229 = vcmp.gt.f32.partialorder %v645, 20.0
  %vm1230 = vcmp.gt.f32.partialorder %v650, 20.0
  %vm1231 = vcmp.gt.f32.partialorder %v653, 20.0
  %v1232 = vmul.f32 %v402, %v1104
  %v1233 = vmul.f32 %v405, %v1105
  %v1234 = vmul.f32 %v410, %v1106
  %v1235 = vmul.f32 %v413, %v1107
  %v1236 = vmul.f32 %v418, %v1108
  %v1237 = vmul.f32 %v421, %v1109
  %v1238 = vmul.f32 %v426, %v1110
  %v1239 = vmul.f32 %v429, %v1111
  %v1240 = vmul.f32 %v434, %v1112
  %v1241 = vmul.f32 %v437, %v1113
  %v1242 = vmul.f32 %v442, %v1114
  %v1243 = vmul.f32 %v445, %v1115
  %v1244 = vmul.f32 %v450, %v1116
  %v1245 = vmul.f32 %v453, %v1117
  %v1246 = vmul.f32 %v458, %v1118
  %v1247 = vmul.f32 %v461, %v1119
  %v1248 = vmul.f32 %v466, %v1120
  %v1249 = vmul.f32 %v469, %v1121
  %v1250 = vmul.f32 %v474, %v1122
  %v1251 = vmul.f32 %v477, %v1123
  %v1252 = vmul.f32 %v482, %v1124
  %v1253 = vmul.f32 %v485, %v1125
  %v1254 = vmul.f32 %v490, %v1126
  %v1255 = vmul.f32 %v493, %v1127
  %v1256 = vmul.f32 %v498, %v1128
  %v1257 = vmul.f32 %v501, %v1129
  %v1258 = vmul.f32 %v506, %v1130
  %v1259 = vmul.f32 %v509, %v1131
  %v1260 = vmul.f32 %v514, %v1132
  %v1261 = vmul.f32 %v517, %v1133
  %v1262 = vmul.f32 %v522, %v1134
  %v1263 = vmul.f32 %v525, %v1135
  %v1264 = vmul.f32 %v530, %v1136
  %v1265 = vmul.f32 %v533, %v1137
  %v1266 = vmul.f32 %v538, %v1138
  %v1267 = vmul.f32 %v541, %v1139
  %v1268 = vmul.f32 %v546, %v1140
  %v1269 = vmul.f32 %v549, %v1141
  %v1270 = vmul.f32 %v554, %v1142
  %v1271 = vmul.f32 %v557, %v1143
  %v1272 = vmul.f32 %v562, %v1144
  %v1273 = vmul.f32 %v565, %v1145
  %v1274 = vmul.f32 %v570, %v1146
  %v1275 = vmul.f32 %v573, %v1147
  %v1276 = vmul.f32 %v578, %v1148
  %v1277 = vmul.f32 %v581, %v1149
  %v1278 = vmul.f32 %v586, %v1150
  %v1279 = vmul.f32 %v589, %v1151
  %v1280 = vmul.f32 %v594, %v1152
  %v1281 = vmul.f32 %v597, %v1153
  %v1282 = vmul.f32 %v602, %v1154
  %v1283 = vmul.f32 %v605, %v1155
  %v1284 = vmul.f32 %v610, %v1156
  %v1285 = vmul.f32 %v613, %v1157
  %v1286 = vmul.f32 %v618, %v1158
  %v1287 = vmul.f32 %v621, %v1159
  %v1288 = vmul.f32 %v626, %v1160
  %v1289 = vmul.f32 %v629, %v1161
  %v1290 = vmul.f32 %v634, %v1162
  %v1291 = vmul.f32 %v637, %v1163
  %v1292 = vmul.f32 %v642, %v1164
  %v1293 = vmul.f32 %v645, %v1165
  %v1294 = vmul.f32 %v650, %v1166
  %v1295 = vmul.f32 %v653, %v1167
  %v1296 = vsel %vm1168, %v402, %v1232
  %v1297 = vsel %vm1169, %v405, %v1233
  %v1298 = vsel %vm1170, %v410, %v1234
  %v1299 = vsel %vm1171, %v413, %v1235
  %v1300 = vsel %vm1172, %v418, %v1236
  %v1301 = vsel %vm1173, %v421, %v1237
  %v1302 = vsel %vm1174, %v426, %v1238
  %v1303 = vsel %vm1175, %v429, %v1239
  %v1304 = vsel %vm1176, %v434, %v1240
  %v1305 = vsel %vm1177, %v437, %v1241
  %v1306 = vsel %vm1178, %v442, %v1242
  %v1307 = vsel %vm1179, %v445, %v1243
  %v1308 = vsel %vm1180, %v450, %v1244
  %v1309 = vsel %vm1181, %v453, %v1245
  %v1310 = vsel %vm1182, %v458, %v1246
  %v1311 = vsel %vm1183, %v461, %v1247
  %v1312 = vsel %vm1184, %v466, %v1248
  %v1313 = vsel %vm1185, %v469, %v1249
  %v1314 = vsel %vm1186, %v474, %v1250
  %v1315 = vsel %vm1187, %v477, %v1251
  %v1316 = vsel %vm1188, %v482, %v1252
  %v1317 = vsel %vm1189, %v485, %v1253
  %v1318 = vsel %vm1190, %v490, %v1254
  %v1319 = vsel %vm1191, %v493, %v1255
  %v1320 = vsel %vm1192, %v498, %v1256
  %v1321 = vsel %vm1193, %v501, %v1257
  %v1322 = vsel %vm1194, %v506, %v1258
  %v1323 = vsel %vm1195, %v509, %v1259
  %v1324 = vsel %vm1196, %v514, %v1260
  %v1325 = vsel %vm1197, %v517, %v1261
  %v1326 = vsel %vm1198, %v522, %v1262
  %v1327 = vsel %vm1199, %v525, %v1263
  %v1328 = vsel %vm1200, %v530, %v1264
  %v1329 = vsel %vm1201, %v533, %v1265
  %v1330 = vsel %vm1202, %v538, %v1266
  %v1331 = vsel %vm1203, %v541, %v1267
  %v1332 = vsel %vm1204, %v546, %v1268
  %v1333 = vsel %vm1205, %v549, %v1269
  %v1334 = vsel %vm1206, %v554, %v1270
  %v1335 = vsel %vm1207, %v557, %v1271
  %v1336 = vsel %vm1208, %v562, %v1272
  %v1337 = vsel %vm1209, %v565, %v1273
  %v1338 = vsel %vm1210, %v570, %v1274
  %v1339 = vsel %vm1211, %v573, %v1275
  %v1340 = vsel %vm1212, %v578, %v1276
  %v1341 = vsel %vm1213, %v581, %v1277
  %v1342 = vsel %vm1214, %v586, %v1278
  %v1343 = vsel %vm1215, %v589, %v1279
  %v1344 = vsel %vm1216, %v594, %v1280
  %v1345 = vsel %vm1217, %v597, %v1281
  %v1346 = vsel %vm1218, %v602, %v1282
  %v1347 = vsel %vm1219, %v605, %v1283
  %v1348 = vsel %vm1220, %v610, %v1284
  %v1349 = vsel %vm1221, %v613, %v1285
  %v1350 = vsel %vm1222, %v618, %v1286
  %v1351 = vsel %vm1223, %v621, %v1287
  %v1352 = vsel %vm1224, %v626, %v1288
  %v1353 = vsel %vm1225, %v629, %v1289
  %v1354 = vsel %vm1226, %v634, %v1290
  %v1355 = vsel %vm1227, %v637, %v1291
  %v1356 = vsel %vm1228, %v642, %v1292
  %v1357 = vsel %vm1229, %v645, %v1293
  %v1358 = vsel %vm1230, %v650, %v1294
  %v1359 = vsel %vm1231, %v653, %v1295
  %1360 = vst [vmem:[%s3] sm:$0xff] %v1296
  %1361 = vst [vmem:[%s3 + $0x8] sm:$0xff] %v1297
  %1362 = vst [vmem:[%s3 + $0x10] sm:$0xff] %v1298
  %1363 = vst [vmem:[%s3 + $0x18] sm:$0xff] %v1299
  %1364 = vst [vmem:[%s3 + $0x20] sm:$0xff] %v1300
  %1365 = vst [vmem:[%s3 + $0x28] sm:$0xff] %v1301
  %1366 = vst [vmem:[%s3 + $0x30] sm:$0xff] %v1302
  %1367 = vst [vmem:[%s3 + $0x38] sm:$0xff] %v1303
  %1368 = vst [vmem:[%s3 + $0x40] sm:$0xff] %v1304
  %1369 = vst [vmem:[%s3 + $0x48] sm:$0xff] %v1305
  %1370 = vst [vmem:[%s3 + $0x50] sm:$0xff] %v1306
  %1371 = vst [vmem:[%s3 + $0x58] sm:$0xff] %v1307
  %1372 = vst [vmem:[%s3 + $0x60] sm:$0xff] %v1308
  %1373 = vst [vmem:[%s3 + $0x68] sm:$0xff] %v1309
  %1374 = vst [vmem:[%s3 + $0x70] sm:$0xff] %v1310
  %1375 = vst [vmem:[%s3 + $0x78] sm:$0xff] %v1311
  %1376 = vst [vmem:[%s3 + $0x80] sm:$0xff] %v1312
  %1377 = vst [vmem:[%s3 + $0x88] sm:$0xff] %v1313
  %1378 = vst [vmem:[%s3 + $0x90] sm:$0xff] %v1314
  %1379 = vst [vmem:[%s3 + $0x98] sm:$0xff] %v1315
  %1380 = vst [vmem:[%s3 + $0xa0] sm:$0xff] %v1316
  %1381 = vst [vmem:[%s3 + $0xa8] sm:$0xff] %v1317
  %1382 = vst [vmem:[%s3 + $0xb0] sm:$0xff] %v1318
  %1383 = vst [vmem:[%s3 + $0xb8] sm:$0xff] %v1319
  %1384 = vst [vmem:[%s3 + $0xc0] sm:$0xff] %v1320
  %1385 = vst [vmem:[%s3 + $0xc8] sm:$0xff] %v1321
  %1386 = vst [vmem:[%s3 + $0xd0] sm:$0xff] %v1322
  %1387 = vst [vmem:[%s3 + $0xd8] sm:$0xff] %v1323
  %1388 = vst [vmem:[%s3 + $0xe0] sm:$0xff] %v1324
  %1389 = vst [vmem:[%s3 + $0xe8] sm:$0xff] %v1325
  %1390 = vst [vmem:[%s3 + $0xf0] sm:$0xff] %v1326
  %1391 = vst [vmem:[%s3 + $0xf8] sm:$0xff] %v1327
  %1392 = vst [vmem:[%s3 + $0x100] sm:$0xff] %v1328
  %1393 = vst [vmem:[%s3 + $0x108] sm:$0xff] %v1329
  %1394 = vst [vmem:[%s3 + $0x110] sm:$0xff] %v1330
  %1395 = vst [vmem:[%s3 + $0x118] sm:$0xff] %v1331
  %1396 = vst [vmem:[%s3 + $0x120] sm:$0xff] %v1332
  %1397 = vst [vmem:[%s3 + $0x128] sm:$0xff] %v1333
  %1398 = vst [vmem:[%s3 + $0x130] sm:$0xff] %v1334
  %1399 = vst [vmem:[%s3 + $0x138] sm:$0xff] %v1335
  %1400 = vst [vmem:[%s3 + $0x140] sm:$0xff] %v1336
  %1401 = vst [vmem:[%s3 + $0x148] sm:$0xff] %v1337
  %1402 = vst [vmem:[%s3 + $0x150] sm:$0xff] %v1338
  %1403 = vst [vmem:[%s3 + $0x158] sm:$0xff] %v1339
  %1404 = vst [vmem:[%s3 + $0x160] sm:$0xff] %v1340
  %1405 = vst [vmem:[%s3 + $0x168] sm:$0xff] %v1341
  %1406 = vst [vmem:[%s3 + $0x170] sm:$0xff] %v1342
  %1407 = vst [vmem:[%s3 + $0x178] sm:$0xff] %v1343
  %1408 = vst [vmem:[%s3 + $0x180] sm:$0xff] %v1344
  %1409 = vst [vmem:[%s3 + $0x188] sm:$0xff] %v1345
  %1410 = vst [vmem:[%s3 + $0x190] sm:$0xff] %v1346
  %1411 = vst [vmem:[%s3 + $0x198] sm:$0xff] %v1347
  %1412 = vst [vmem:[%s3 + $0x1a0] sm:$0xff] %v1348
  %1413 = vst [vmem:[%s3 + $0x1a8] sm:$0xff] %v1349
  %1414 = vst [vmem:[%s3 + $0x1b0] sm:$0xff] %v1350
  %1415 = vst [vmem:[%s3 + $0x1b8] sm:$0xff] %v1351
  %1416 = vst [vmem:[%s3 + $0x1c0] sm:$0xff] %v1352
  %1417 = vst [vmem:[%s3 + $0x1c8] sm:$0xff] %v1353
  %1418 = vst [vmem:[%s3 + $0x1d0] sm:$0xff] %v1354
  %1419 = vst [vmem:[%s3 + $0x1d8] sm:$0xff] %v1355
  %1420 = vst [vmem:[%s3 + $0x1e0] sm:$0xff] %v1356
  %1421 = vst [vmem:[%s3 + $0x1e8] sm:$0xff] %v1357
  %1422 = vst [vmem:[%s3 + $0x1f0] sm:$0xff] %v1358
  %1423 = vst [vmem:[%s3 + $0x1f8] sm:$0xff] %v1359
  // Predicated region
  $region14: #{conv_block.1} parent=0 // pred_check
    _
  $region15: #{conv_block.1} parent=0 // pred_check_branch
    %1425 = sbr.rel (0) target = $region17
  $region16: #{conv_block.1} parent=0 // pred_region
    _
  $region17: #{conv_block.1} parent=0 // pred_fallthru
    _
  // Predicated region
  $region18: #{conv_block.1} parent=0 // pred_check
    _
  $region19: #{conv_block.1} parent=0 // pred_check_branch
    %1427 = sbr.rel (0) target = $region21
  $region20: #{conv_block.1} parent=0 // pred_region
    _
  $region21: #{conv_block.1} parent=0 // pred_fallthru
    _

</llo_original>
